<compile_context>
chip_gen: v7x
topology: tpu7x:2x2x1
jax: 0.10.0
libtpu: 0.0.40
codegen_flags: <defaults>
</compile_context>

<pallas_src>
import functools

import jax
import jax.numpy as jnp
from jax.experimental import pallas as pl
from jax.experimental.pallas import tpu as pltpu

LANE = 128
SUBLANE = 8


def _round_up(x, m):
    return (x + m - 1) // m * m


def _mlp_kernel(x_ref, w_ref, b_ref, o_ref, *, num_layers, k_in, n_out,
                compute_dtype):
    """Fused MLP over one batch tile.

    x_ref: (TM, k_in)        activation tile (batch on sublanes, REAL input features on lanes)
    w_ref: (L, Dpad, Dpad)   packed weights ((in, out) layout, zero-padded), VMEM-resident
    b_ref: (L, 1, Dpad)      packed f32 biases (zero-padded), VMEM-resident
    o_ref: (TM, n_out)       lane-dense padded output tile
    """
    dpad = w_ref.shape[1]
    h = x_ref[...]                                        # f32 activations
    for l in range(num_layers):                           # static unroll; L is tiny
        k = k_in if l == 0 else dpad                      # real weight rows for this layer
        n = n_out if l == num_layers - 1 else dpad
        lhs = h.astype(compute_dtype)                     # bf16 feeds the MXU (no-op if f32)
        h = jnp.dot(lhs, w_ref[l, :k, :n],
                    preferred_element_type=jnp.float32) + b_ref[l, :, :n]
        if l < num_layers - 1:                            # last layer is linear
            h = jnp.maximum(h, 0.0)
    o_ref[...] = h.astype(o_ref.dtype)


def prepare_params(params, input_size, hidden_sizes, output_size,
                   param_dtype=jnp.bfloat16):
    """One-time parameter prep, hoisted out of the forward hot path.

    - transpose PyTorch-layout (out, in) weights to (in, out)
    - zero-pad feature dims up to a common lane-dense Dpad (multiple of 128)
    - pack all weights into (L, Dpad, Dpad) [bf16 by default: MXU-native,
      halves weight DMA/VMEM] and all biases into (L, 1, Dpad) f32.
    """
    sizes = [input_size] + list(hidden_sizes) + [output_size]
    num_layers = len(sizes) - 1
    dpad = _round_up(max(sizes), LANE)
    out_pad = _round_up(sizes[-1], LANE)

    w_packed = jnp.zeros((num_layers, dpad, dpad), param_dtype)
    b_packed = jnp.zeros((num_layers, 1, dpad), jnp.float32)
    for l in range(num_layers):
        w = params[f"w{l + 1}"].T.astype(param_dtype)     # (in, out)
        b = params[f"b{l + 1}"].astype(jnp.float32)
        w_packed = w_packed.at[l, : w.shape[0], : w.shape[1]].set(w)
        b_packed = b_packed.at[l, 0, : b.shape[0]].set(b)

    meta = dict(num_layers=num_layers, dpad=dpad, out_pad=out_pad,
                input_size=input_size, output_size=sizes[-1])
    return w_packed, b_packed, meta


@functools.partial(
    jax.jit,
    static_argnames=("num_layers", "dpad", "out_pad", "input_size",
                     "output_size", "tile_m", "padded_output"))
def _mlp_forward_impl(x, w_packed, b_packed, *, num_layers, dpad, out_pad,
                      input_size, output_size, tile_m, padded_output):
    B = x.shape[0]
    b_pad = _round_up(max(B, 1), tile_m)
    # Row-only padding (features are NOT padded); zero copies when B is already
    # a multiple of tile_m.
    if b_pad == B:
        x_p = x
    else:
        x_p = jnp.zeros((b_pad, input_size), x.dtype).at[:B].set(x)

    # Constant index_map -> params never re-DMA; single buffer saves VMEM.
    resident = pl.Buffered(1)

    out = pl.pallas_call(
        functools.partial(_mlp_kernel, num_layers=num_layers, k_in=input_size,
                          n_out=out_pad, compute_dtype=w_packed.dtype),
        out_shape=jax.ShapeDtypeStruct((b_pad, out_pad), jnp.float32),
        grid_spec=pltpu.PrefetchScalarGridSpec(
            num_scalar_prefetch=0,
            grid=(b_pad // tile_m,),
            in_specs=[
                # activations stream tile-by-tile (double-buffered by Pallas);
                # last dim == full array dim, so no (8,128) constraint issue.
                pl.BlockSpec((tile_m, input_size), lambda i: (i, 0)),
                # weights/biases: whole array, constant block index -> VMEM-resident
                pl.BlockSpec((num_layers, dpad, dpad), lambda i: (0, 0, 0),
                             pipeline_mode=resident),
                pl.BlockSpec((num_layers, 1, dpad), lambda i: (0, 0, 0),
                             pipeline_mode=resident),
            ],
            out_specs=pl.BlockSpec((tile_m, out_pad), lambda i: (i, 0)),
        ),
        compiler_params=pltpu.CompilerParams(
            dimension_semantics=("parallel",),   # shard batch tiles across TCs (v7x)
        ),
    )(x_p, w_packed, b_packed)

    if padded_output:
        return out                      # (b_pad, out_pad); real data in [:B, :output_size]
    return out[:B, :output_size]


def _default_tile_m(batch):
    """Large tiles (amortize ~0.35us/step) but >=2 tiles when B allows, so both
    v7x TensorCores get work. Capped at 512 rows (512x128 f32 = 256 KiB/buffer)."""
    b = max(int(batch), 1)
    half = _round_up(-(-b // 2), SUBLANE)          # ceil(B/2) rounded to sublanes
    return max(SUBLANE, min(512, half))


def mlp_forward(x, w_packed, b_packed, meta, tile_m=None, padded_output=False):
    """Run the fused MLP Pallas kernel on x: [B, input_size] float32."""
    if tile_m is None:
        tile_m = _default_tile_m(x.shape[0])
    return _mlp_forward_impl(
        x, w_packed, b_packed,
        num_layers=meta["num_layers"], dpad=meta["dpad"],
        out_pad=meta["out_pad"], input_size=meta["input_size"],
        output_size=meta["output_size"], tile_m=tile_m,
        padded_output=padded_output)


def init_params(key, input_size, hidden_sizes, output_size):
    """Deterministic init mimicking nn.Linear default U(-1/sqrt(fan_in), 1/sqrt(fan_in))."""
    sizes = [input_size] + list(hidden_sizes) + [output_size]
    params = {}
    keys = jax.random.split(key, 2 * (len(sizes) - 1))
    for i, (n_in, n_out) in enumerate(zip(sizes[:-1], sizes[1:])):
        bound = 1.0 / jnp.sqrt(jnp.float32(n_in))
        wk, bk = keys[2 * i], keys[2 * i + 1]
        params[f"w{i + 1}"] = jax.random.uniform(
            wk, (n_out, n_in), jnp.float32, minval=-bound, maxval=bound)
        params[f"b{i + 1}"] = jax.random.uniform(
            bk, (n_out,), jnp.float32, minval=-bound, maxval=bound)
    return params


def mlp_reference(x, params):
    """Pure-JAX reference matching MlpModel.forward semantics."""
    h = jnp.maximum(x @ params["w1"].T + params["b1"], 0.0)
    h = jnp.maximum(h @ params["w2"].T + params["b2"], 0.0)
    return h @ params["w3"].T + params["b3"]


if __name__ == "__main__":
    # MlpModel(input_size=32, hidden_sizes=[64, 64], output_size=16)
    # TODO(synk): dropout / non-ReLU nonlinearity options of the PyTorch module are
    # not exercised here (module defaults: ReLU, no dropout).
    input_size, hidden_sizes, output_size = 32, [64, 64], 16
    batch = 8

    key = jax.random.PRNGKey(0)
    pkey, xkey = jax.random.split(key)
    params = init_params(pkey, input_size, hidden_sizes, output_size)

    x = jax.random.normal(xkey, (batch, input_size), jnp.float32)
    ref = mlp_reference(x, params)

    # Exact-semantics path: f32 packed weights, tight tolerance.
    w32, b32, meta32 = prepare_params(params, input_size, hidden_sizes,
                                      output_size, param_dtype=jnp.float32)
    out32 = jax.block_until_ready(mlp_forward(x, w32, b32, meta32))
    assert out32.shape == (batch, output_size)
    assert jnp.allclose(out32, ref, atol=1e-5, rtol=1e-5), "f32 mismatch vs reference"

    # Fast path: bf16 packed weights (MXU-native), f32 accumulation -> looser tol.
    wbf, bbf, metabf = prepare_params(params, input_size, hidden_sizes, output_size)
    outbf = jax.block_until_ready(mlp_forward(x, wbf, bbf, metabf))
    assert outbf.shape == (batch, output_size)
    assert jnp.allclose(outbf, ref, atol=5e-2, rtol=5e-2), "bf16 mismatch vs reference"

    # Batched grid path: >=2 streamed activation tiles (engages both v7x TCs) and
    # lane-dense padded output consumed directly (no wrapper slice pass).
    x2 = jax.random.normal(jax.random.PRNGKey(1), (24, input_size), jnp.float32)
    ref2 = mlp_reference(x2, params)
    out2_pad = jax.block_until_ready(
        mlp_forward(x2, wbf, bbf, metabf, padded_output=True))
    assert out2_pad.shape[1] == metabf["out_pad"]
    assert jnp.allclose(out2_pad[:24, :output_size], ref2, atol=5e-2, rtol=5e-2), \
        "grid>1 mismatch"

    print("KERNEL_OK")
</pallas_src>

<mosaic_0001>
module attributes {stable_mosaic.version = 11 : i64} {
  func.func @_mlp_kernel(%arg0: i32, %arg1: memref<8x32xf32, #tpu.memory_space<vmem>>, %arg2: memref<3x128x128xf32, #tpu.memory_space<vmem>>, %arg3: memref<3x1x128xf32, #tpu.memory_space<vmem>>, %arg4: memref<8x128xf32, #tpu.memory_space<vmem>>) attributes {dimension_semantics = [#tpu.dimension_semantics<parallel>], iteration_bounds = array<i64: 1>, scalar_prefetch = 0 : i64, scratch_operands = 0 : i64, tpu.core_type = #tpu.core_type<tc>, window_params = [{transform_indices = @transform_0, window_bounds = array<i64: 8, 32>}, {pipeline_mode = #tpu.pipeline_mode<synchronous>, transform_indices = @transform_1, window_bounds = array<i64: 3, 128, 128>}, {pipeline_mode = #tpu.pipeline_mode<synchronous>, transform_indices = @transform_2, window_bounds = array<i64: 3, 1, 128>}, {transform_indices = @transform_3, window_bounds = array<i64: 8, 128>}]} {
    %c0 = arith.constant 0 : index
    %c0_0 = arith.constant 0 : index
    %0 = vector.load %arg1[%c0, %c0_0] : memref<8x32xf32, #tpu.memory_space<vmem>>, vector<8x32xf32>
    %c0_1 = arith.constant 0 : index
    %c0_2 = arith.constant 0 : index
    %c0_3 = arith.constant 0 : index
    %1 = vector.load %arg2[%c0_1, %c0_2, %c0_3] : memref<3x128x128xf32, #tpu.memory_space<vmem>>, vector<1x32x128xf32>
    %2 = vector.shape_cast %1 : vector<1x32x128xf32> to vector<32x128xf32>
    %cst = arith.constant dense<0.000000e+00> : vector<8x128xf32>
    %3 = tpu.matmul %0, %2, %cst {dimension_numbers = #tpu.dot_dimension_numbers<[1], [0], [0], [1], [0, 0, 1, 1], [], []>} : vector<8x32xf32>, vector<32x128xf32>, vector<8x128xf32> -> vector<8x128xf32>
    %c0_4 = arith.constant 0 : index
    %c0_5 = arith.constant 0 : index
    %c0_6 = arith.constant 0 : index
    %4 = vector.load %arg3[%c0_4, %c0_5, %c0_6] : memref<3x1x128xf32, #tpu.memory_space<vmem>>, vector<1x1x128xf32>
    %5 = vector.shape_cast %4 : vector<1x1x128xf32> to vector<1x128xf32>
    %6 = vector.broadcast %5 : vector<1x128xf32> to vector<8x128xf32>
    %7 = arith.addf %3, %6 : vector<8x128xf32>
    %cst_7 = arith.constant 0.000000e+00 : f32
    %8 = vector.broadcast %cst_7 : f32 to vector<8x128xf32>
    %9 = arith.maximumf %7, %8 : vector<8x128xf32>
    %c1 = arith.constant 1 : index
    %c0_8 = arith.constant 0 : index
    %c0_9 = arith.constant 0 : index
    %10 = vector.load %arg2[%c1, %c0_8, %c0_9] : memref<3x128x128xf32, #tpu.memory_space<vmem>>, vector<1x128x128xf32>
    %11 = vector.shape_cast %10 : vector<1x128x128xf32> to vector<128x128xf32>
    %cst_10 = arith.constant dense<0.000000e+00> : vector<8x128xf32>
    %12 = tpu.matmul %9, %11, %cst_10 {dimension_numbers = #tpu.dot_dimension_numbers<[1], [0], [0], [1], [0, 0, 1, 1], [], []>} : vector<8x128xf32>, vector<128x128xf32>, vector<8x128xf32> -> vector<8x128xf32>
    %c1_11 = arith.constant 1 : index
    %c0_12 = arith.constant 0 : index
    %c0_13 = arith.constant 0 : index
    %13 = vector.load %arg3[%c1_11, %c0_12, %c0_13] : memref<3x1x128xf32, #tpu.memory_space<vmem>>, vector<1x1x128xf32>
    %14 = vector.shape_cast %13 : vector<1x1x128xf32> to vector<1x128xf32>
    %15 = vector.broadcast %14 : vector<1x128xf32> to vector<8x128xf32>
    %16 = arith.addf %12, %15 : vector<8x128xf32>
    %cst_14 = arith.constant 0.000000e+00 : f32
    %17 = vector.broadcast %cst_14 : f32 to vector<8x128xf32>
    %18 = arith.maximumf %16, %17 : vector<8x128xf32>
    %c2 = arith.constant 2 : index
    %c0_15 = arith.constant 0 : index
    %c0_16 = arith.constant 0 : index
    %19 = vector.load %arg2[%c2, %c0_15, %c0_16] : memref<3x128x128xf32, #tpu.memory_space<vmem>>, vector<1x128x128xf32>
    %20 = vector.shape_cast %19 : vector<1x128x128xf32> to vector<128x128xf32>
    %cst_17 = arith.constant dense<0.000000e+00> : vector<8x128xf32>
    %21 = tpu.matmul %18, %20, %cst_17 {dimension_numbers = #tpu.dot_dimension_numbers<[1], [0], [0], [1], [0, 0, 1, 1], [], []>} : vector<8x128xf32>, vector<128x128xf32>, vector<8x128xf32> -> vector<8x128xf32>
    %c2_18 = arith.constant 2 : index
    %c0_19 = arith.constant 0 : index
    %c0_20 = arith.constant 0 : index
    %22 = vector.load %arg3[%c2_18, %c0_19, %c0_20] : memref<3x1x128xf32, #tpu.memory_space<vmem>>, vector<1x1x128xf32>
    %23 = vector.shape_cast %22 : vector<1x1x128xf32> to vector<1x128xf32>
    %24 = vector.broadcast %23 : vector<1x128xf32> to vector<8x128xf32>
    %25 = arith.addf %21, %24 : vector<8x128xf32>
    %c0_21 = arith.constant 0 : index
    %c0_22 = arith.constant 0 : index
    %26 = vector.load %arg4[%c0_21, %c0_22] : memref<8x128xf32, #tpu.memory_space<vmem>>, vector<8x128xf32>
    tpu.vector_store %arg4[%c0_21, %c0_22], %25 {strides = array<i32>} : memref<8x128xf32, #tpu.memory_space<vmem>>, vector<8x128xf32>,
    return
  }
  func.func @transform_0(%arg0: i32) -> (i32, i32) {
    %c0_i32 = arith.constant 0 : i32
    %c0_i32_0 = arith.constant 0 : i32
    return %arg0, %c0_i32 : i32, i32
  }
  func.func @transform_1(%arg0: i32) -> (i32, i32, i32) {
    %c0_i32 = arith.constant 0 : i32
    %c0_i32_0 = arith.constant 0 : i32
    %c0_i32_1 = arith.constant 0 : i32
    %c0_i32_2 = arith.constant 0 : i32
    return %c0_i32, %c0_i32_0, %c0_i32_1 : i32, i32, i32
  }
  func.func @transform_2(%arg0: i32) -> (i32, i32, i32) {
    %c0_i32 = arith.constant 0 : i32
    %c0_i32_0 = arith.constant 0 : i32
    %c0_i32_1 = arith.constant 0 : i32
    %c0_i32_2 = arith.constant 0 : i32
    return %c0_i32, %c0_i32_0, %c0_i32_1 : i32, i32, i32
  }
  func.func @transform_3(%arg0: i32) -> (i32, i32) {
    %c0_i32 = arith.constant 0 : i32
    %c0_i32_0 = arith.constant 0 : i32
    return %arg0, %c0_i32 : i32, i32
  }
}

</mosaic_0001>

<llo_original>
// kernel: _mlp_forward_impl.1
$region0: #{_mlp_forward_impl.1}
  #allocation0 [shape = 'u32[]', space=smem, size = 0x4, offset = 0x4, fixed_abs, tag = 'smem constant byte address 0x4 - core index']
  #allocation1 [shape = 'u32[144,128]{1,0:T(1,128)}', space=vmem, size = 0x12000, scoped, tag = 'internal scratch']
  %s0 = inlined_call_operand.hbm [shape: f32[8,32], index: 0, kind: input, shape index: {}]
  %s1 = inlined_call_operand.hbm [shape: f32[3,128,128], index: 1, kind: input, shape index: {}]
  %s2 = inlined_call_operand.vmem [shape: f32[3,1,128], index: 2, kind: input, shape index: {}]
  %s3 = inlined_call_operand.hbm [shape: f32[8,128], index: 3, kind: output, shape index: {}]
  %s4 = sld [smem:[#allocation0]]
  $region30: #{_mlp_forward_impl.1} parent=0
    _
  %s6 = ssub.s32 1, %s4
  %s7 = scalar_select 0, %s6, %s4
  $region1: #{_mlp_forward_impl.1} parent=0
    #allocation2 [shape = 'u8[4096]{0}', space=vmem, size = 0x1000, scoped, tag = 'input window, operand 0, single buffered']
    #allocation3 [shape = 's32[1]{0}', space=sflag, size = 0x4, scoped, tag = 'scoped memory for _mlp_forward_impl.1']
    #allocation4 [shape = 's32[1]{0}', space=sflag, size = 0x4, scoped, tag = 'scoped memory for _mlp_forward_impl.1']
    #allocation5 [shape = 'u8[196608]{0}', space=vmem, size = 0x30000, scoped, tag = 'input window, operand 1, single buffered']
    #allocation6 [shape = 's32[1]{0}', space=sflag, size = 0x4, scoped, tag = 'scoped memory for _mlp_forward_impl.1']
    #allocation7 [shape = 'u8[4096]{0}', space=vmem, size = 0x1000, scoped, tag = 'output window, operand 0, single buffered']
    %8 = vsyncpa [#allocation3], 0
    %9 = vsyncpa [#allocation6], 0
    %10 = vsyncpa [#allocation4], 0
    // Predicated region
    $region2: #{_mlp_forward_impl.1} parent=1 // pred_check
      _
    $region3: #{_mlp_forward_impl.1} parent=1 // pred_check_branch
      %12 = sbr.rel (0) target = $region5
    $region4: #{_mlp_forward_impl.1} parent=1 // pred_region
      %s14 = ssub.s32 128, 128
      %15 = vsyncadd [#allocation3], %s14
      %s17 = sshll.u32 [#allocation2], 4
      %s18 = int_to_ptr.vmem [resolvable:$true] %s17
      %20 = dma.hbm_to_vmem [thread:$0]  %s0, 128, %s18, [#allocation3]
    $region5: #{_mlp_forward_impl.1} parent=1 // pred_fallthru
      _
    // Predicated region
    $region6: #{_mlp_forward_impl.1} parent=1 // pred_check
      _
    $region7: #{_mlp_forward_impl.1} parent=1 // pred_check_branch
      %22 = sbr.rel (0) target = $region9
    $region8: #{_mlp_forward_impl.1} parent=1 // pred_region
      %s24 = ssub.s32 6144, 6144
      %25 = vsyncadd [#allocation6], %s24
      %s26 = sshll.u32 [#allocation5], 4
      %s27 = int_to_ptr.vmem [resolvable:$true] %s26
      %32 = dma.hbm_to_vmem [thread:$0]  %s1, 6144, %s27, [#allocation6], 128, 128, 8
    $region9: #{_mlp_forward_impl.1} parent=1 // pred_fallthru
      _
    // Predicated region
    $region10: #{_mlp_forward_impl.1} parent=1 // pred_check
      _
    $region11: #{_mlp_forward_impl.1} parent=1 // pred_check_branch
      %34 = sbr.rel (0) target = $region13
    $region12: #{_mlp_forward_impl.1} parent=1 // pred_region
      _
    $region13: #{_mlp_forward_impl.1} parent=1 // pred_fallthru
      _
    // Predicated region
    $region14: #{_mlp_forward_impl.1} parent=1 // pred_check
      _
    $region15: #{_mlp_forward_impl.1} parent=1 // pred_check_branch
      %36 = sbr.rel (0) target = $region17
    $region16: #{_mlp_forward_impl.1} parent=1 // pred_region
      %37 = dma.done [#allocation3], 128
    $region17: #{_mlp_forward_impl.1} parent=1 // pred_fallthru
      _
    // Predicated region
    $region18: #{_mlp_forward_impl.1} parent=1 // pred_check
      _
    $region19: #{_mlp_forward_impl.1} parent=1 // pred_check_branch
      %39 = sbr.rel (0) target = $region21
    $region20: #{_mlp_forward_impl.1} parent=1 // pred_region
      %40 = dma.done [#allocation6], 6144
    $region21: #{_mlp_forward_impl.1} parent=1 // pred_fallthru
      _
    %v41 = vld [vmem:[#allocation2] sm:$0xff]
    %v42 = vld [vmem:[#allocation5] sm:$0xff]
    %v43 = vld [vmem:[#allocation5 + $0x8] sm:$0xff]
    %v44 = vld [vmem:[#allocation5 + $0x10] sm:$0xff]
    %v45 = vld [vmem:[#allocation5 + $0x18] sm:$0xff]
    %v46 = vld [vmem:[%s2] sm:$0x1]
    %v48 = vlaneseq
    %v49 = vshrl.u32 %v48, 7
    %v50 = vsub.s32 0, %v49
    %v51 = vrot.slane %v46, %v50
    %vm53 = vcmask 261120
    %v55 = vsel %vm53, %v41, 0
    %57 = vmatprep.subr.mxu0 0.0
    %58 = vmatpush1.msra.mxu0 %v42
    %59 = vmatprep.subr.mxu0 0.0
    %60 = vmatpush1.msra.mxu0 %v43
    %61 = vmatprep.subr.mxu0 0.0
    %62 = vmatpush1.msra.mxu0 %v44
    %63 = vmatprep.subr.mxu0 0.0
    %64 = vmatpush1.msra.mxu0 %v45
    %65 = vmatprep.subr.mxu0 0.0
    %66 = vmatpush1.msra.mxu0 0.0
    %67 = vmatprep.subr.mxu0 0.0
    %68 = vmatpush1.msra.mxu0 0.0
    %69 = vmatprep.subr.mxu0 0.0
    %70 = vmatpush1.msra.mxu0 0.0
    %71 = vmatprep.subr.mxu0 0.0
    %72 = vmatpush1.msra.mxu0 0.0
    %73 = vmatprep.subr.mxu0 0.0
    %74 = vmatpush1.msra.mxu0 0.0
    %75 = vmatprep.subr.mxu0 0.0
    %76 = vmatpush1.msra.mxu0 0.0
    %77 = vmatprep.subr.mxu0 0.0
    %78 = vmatpush1.msra.mxu0 0.0
    %79 = vmatprep.subr.mxu0 0.0
    %80 = vmatpush1.msra.mxu0 0.0
    %81 = vmatprep.subr.mxu0 0.0
    %82 = vmatpush1.msra.mxu0 0.0
    %83 = vmatprep.subr.mxu0 0.0
    %84 = vmatpush1.msra.mxu0 0.0
    %85 = vmatprep.subr.mxu0 0.0
    %86 = vmatpush1.msra.mxu0 0.0
    %87 = vmatprep.subr.mxu0 0.0
    %88 = vmatpush1.msra.mxu0 0.0
    %89 = vmatprep.subr.mxu0 0.0
    %90 = vmatpush1.msra.mxu0 0.0
    %91 = vmatprep.subr.mxu0 0.0
    %92 = vmatpush1.msra.mxu0 0.0
    %93 = vmatprep.subr.mxu0 0.0
    %94 = vmatpush1.msra.mxu0 0.0
    %95 = vmatprep.subr.mxu0 0.0
    %96 = vmatpush1.msra.mxu0 0.0
    %97 = vmatprep.subr.mxu0 0.0
    %98 = vmatpush1.msra.mxu0 0.0
    %99 = vmatprep.subr.mxu0 0.0
    %100 = vmatpush1.msra.mxu0 0.0
    %101 = vmatprep.subr.mxu0 0.0
    %102 = vmatpush1.msra.mxu0 0.0
    %103 = vmatprep.subr.mxu0 0.0
    %104 = vmatpush1.msra.mxu0 0.0
    %105 = vmatprep.subr.mxu0 0.0
    %106 = vmatpush1.msra.mxu0 0.0
    %107 = vmatprep.subr.mxu0 0.0
    %108 = vmatpush1.msra.mxu0 0.0
    %109 = vmatprep.subr.mxu0 0.0
    %110 = vmatpush1.msra.mxu0 0.0
    %111 = vmatprep.subr.mxu0 0.0
    %112 = vmatpush1.msra.mxu0 0.0
    %113 = vmatprep.subr.mxu0 0.0
    %114 = vmatpush1.msra.mxu0 0.0
    %115 = vmatprep.subr.mxu0 0.0
    %116 = vmatpush1.msra.mxu0 0.0
    %117 = vmatprep.subr.mxu0 0.0
    %118 = vmatpush1.msra.mxu0 0.0
    %119 = vmatprep.subr.mxu0 0.0
    %120 = vmatpush1.msra.mxu0 0.0
    %121 = vmatprep.mubr.f32.mxu0 0.0
    %122 = vmatmul.mubr.f32.gmra.mrb[0].mxu0 %v55
    %v123 = vpop.f32.mrb[0].mxu0
    %v124 = vadd.f32 %v51, %v123
    %v125 = vpop.f32.mrb[0].mxu0
    %126 = vdwg.mxu0
    %v127 = vmax.f32 %v124, 0.0
    %s128 = scalar_lea.vmem [#allocation5], 128
    %v129 = vld [vmem:[%s128] sm:$0xff]
    %v130 = vld [vmem:[%s128 + $0x8] sm:$0xff]
    %v131 = vld [vmem:[%s128 + $0x10] sm:$0xff]
    %v132 = vld [vmem:[%s128 + $0x18] sm:$0xff]
    %v133 = vld [vmem:[%s128 + $0x20] sm:$0xff]
    %v134 = vld [vmem:[%s128 + $0x28] sm:$0xff]
    %v135 = vld [vmem:[%s128 + $0x30] sm:$0xff]
    %v136 = vld [vmem:[%s128 + $0x38] sm:$0xff]
    %v137 = vld [vmem:[%s128 + $0x40] sm:$0xff]
    %v138 = vld [vmem:[%s128 + $0x48] sm:$0xff]
    %v139 = vld [vmem:[%s128 + $0x50] sm:$0xff]
    %v140 = vld [vmem:[%s128 + $0x58] sm:$0xff]
    %v141 = vld [vmem:[%s128 + $0x60] sm:$0xff]
    %v142 = vld [vmem:[%s128 + $0x68] sm:$0xff]
    %v143 = vld [vmem:[%s128 + $0x70] sm:$0xff]
    %v144 = vld [vmem:[%s128 + $0x78] sm:$0xff]
    %s145 = scalar_lea.vmem %s2, 1
    %v146 = vld [vmem:[%s145] sm:$0x1]
    %v148 = vlaneseq
    %v149 = vshrl.u32 %v148, 7
    %v150 = vsub.s32 0, %v149
    %v151 = vrot.slane %v146, %v150
    %153 = vmatprep.subr.mxu0 0.0
    %154 = vmatpush1.msra.mxu0 %v129
    %155 = vmatprep.subr.mxu0 0.0
    %156 = vmatpush1.msra.mxu0 %v130
    %157 = vmatprep.subr.mxu0 0.0
    %158 = vmatpush1.msra.mxu0 %v131
    %159 = vmatprep.subr.mxu0 0.0
    %160 = vmatpush1.msra.mxu0 %v132
    %161 = vmatprep.subr.mxu0 0.0
    %162 = vmatpush1.msra.mxu0 %v133
    %163 = vmatprep.subr.mxu0 0.0
    %164 = vmatpush1.msra.mxu0 %v134
    %165 = vmatprep.subr.mxu0 0.0
    %166 = vmatpush1.msra.mxu0 %v135
    %167 = vmatprep.subr.mxu0 0.0
    %168 = vmatpush1.msra.mxu0 %v136
    %169 = vmatprep.subr.mxu0 0.0
    %170 = vmatpush1.msra.mxu0 %v137
    %171 = vmatprep.subr.mxu0 0.0
    %172 = vmatpush1.msra.mxu0 %v138
    %173 = vmatprep.subr.mxu0 0.0
    %174 = vmatpush1.msra.mxu0 %v139
    %175 = vmatprep.subr.mxu0 0.0
    %176 = vmatpush1.msra.mxu0 %v140
    %177 = vmatprep.subr.mxu0 0.0
    %178 = vmatpush1.msra.mxu0 %v141
    %179 = vmatprep.subr.mxu0 0.0
    %180 = vmatpush1.msra.mxu0 %v142
    %181 = vmatprep.subr.mxu0 0.0
    %182 = vmatpush1.msra.mxu0 %v143
    %183 = vmatprep.subr.mxu0 0.0
    %184 = vmatpush1.msra.mxu0 %v144
    %185 = vmatprep.subr.mxu0 0.0
    %186 = vmatpush1.msra.mxu0 0.0
    %187 = vmatprep.subr.mxu0 0.0
    %188 = vmatpush1.msra.mxu0 0.0
    %189 = vmatprep.subr.mxu0 0.0
    %190 = vmatpush1.msra.mxu0 0.0
    %191 = vmatprep.subr.mxu0 0.0
    %192 = vmatpush1.msra.mxu0 0.0
    %193 = vmatprep.subr.mxu0 0.0
    %194 = vmatpush1.msra.mxu0 0.0
    %195 = vmatprep.subr.mxu0 0.0
    %196 = vmatpush1.msra.mxu0 0.0
    %197 = vmatprep.subr.mxu0 0.0
    %198 = vmatpush1.msra.mxu0 0.0
    %199 = vmatprep.subr.mxu0 0.0
    %200 = vmatpush1.msra.mxu0 0.0
    %201 = vmatprep.subr.mxu0 0.0
    %202 = vmatpush1.msra.mxu0 0.0
    %203 = vmatprep.subr.mxu0 0.0
    %204 = vmatpush1.msra.mxu0 0.0
    %205 = vmatprep.subr.mxu0 0.0
    %206 = vmatpush1.msra.mxu0 0.0
    %207 = vmatprep.subr.mxu0 0.0
    %208 = vmatpush1.msra.mxu0 0.0
    %209 = vmatprep.subr.mxu0 0.0
    %210 = vmatpush1.msra.mxu0 0.0
    %211 = vmatprep.subr.mxu0 0.0
    %212 = vmatpush1.msra.mxu0 0.0
    %213 = vmatprep.subr.mxu0 0.0
    %214 = vmatpush1.msra.mxu0 0.0
    %215 = vmatprep.subr.mxu0 0.0
    %216 = vmatpush1.msra.mxu0 0.0
    %217 = vmatprep.mubr.f32.mxu0 0.0
    %218 = vmatmul.mubr.f32.gmra.mrb[0].mxu0 %v127
    %v219 = vpop.f32.mrb[0].mxu0
    %v220 = vadd.f32 %v151, %v219
    %v221 = vpop.f32.mrb[0].mxu0
    %222 = vdwg.mxu0
    %v223 = vmax.f32 %v220, 0.0
    %s224 = scalar_lea.vmem [#allocation5], 256
    %v225 = vld [vmem:[%s224] sm:$0xff]
    %v226 = vld [vmem:[%s224 + $0x8] sm:$0xff]
    %v227 = vld [vmem:[%s224 + $0x10] sm:$0xff]
    %v228 = vld [vmem:[%s224 + $0x18] sm:$0xff]
    %v229 = vld [vmem:[%s224 + $0x20] sm:$0xff]
    %v230 = vld [vmem:[%s224 + $0x28] sm:$0xff]
    %v231 = vld [vmem:[%s224 + $0x30] sm:$0xff]
    %v232 = vld [vmem:[%s224 + $0x38] sm:$0xff]
    %v233 = vld [vmem:[%s224 + $0x40] sm:$0xff]
    %v234 = vld [vmem:[%s224 + $0x48] sm:$0xff]
    %v235 = vld [vmem:[%s224 + $0x50] sm:$0xff]
    %v236 = vld [vmem:[%s224 + $0x58] sm:$0xff]
    %v237 = vld [vmem:[%s224 + $0x60] sm:$0xff]
    %v238 = vld [vmem:[%s224 + $0x68] sm:$0xff]
    %v239 = vld [vmem:[%s224 + $0x70] sm:$0xff]
    %v240 = vld [vmem:[%s224 + $0x78] sm:$0xff]
    %s241 = scalar_lea.vmem %s2, 2
    %v242 = vld [vmem:[%s241] sm:$0x1]
    %v244 = vlaneseq
    %v245 = vshrl.u32 %v244, 7
    %v246 = vsub.s32 0, %v245
    %v247 = vrot.slane %v242, %v246
    %249 = vmatprep.subr.mxu0 0.0
    %250 = vmatpush1.msra.mxu0 %v225
    %251 = vmatprep.subr.mxu0 0.0
    %252 = vmatpush1.msra.mxu0 %v226
    %253 = vmatprep.subr.mxu0 0.0
    %254 = vmatpush1.msra.mxu0 %v227
    %255 = vmatprep.subr.mxu0 0.0
    %256 = vmatpush1.msra.mxu0 %v228
    %257 = vmatprep.subr.mxu0 0.0
    %258 = vmatpush1.msra.mxu0 %v229
    %259 = vmatprep.subr.mxu0 0.0
    %260 = vmatpush1.msra.mxu0 %v230
    %261 = vmatprep.subr.mxu0 0.0
    %262 = vmatpush1.msra.mxu0 %v231
    %263 = vmatprep.subr.mxu0 0.0
    %264 = vmatpush1.msra.mxu0 %v232
    %265 = vmatprep.subr.mxu0 0.0
    %266 = vmatpush1.msra.mxu0 %v233
    %267 = vmatprep.subr.mxu0 0.0
    %268 = vmatpush1.msra.mxu0 %v234
    %269 = vmatprep.subr.mxu0 0.0
    %270 = vmatpush1.msra.mxu0 %v235
    %271 = vmatprep.subr.mxu0 0.0
    %272 = vmatpush1.msra.mxu0 %v236
    %273 = vmatprep.subr.mxu0 0.0
    %274 = vmatpush1.msra.mxu0 %v237
    %275 = vmatprep.subr.mxu0 0.0
    %276 = vmatpush1.msra.mxu0 %v238
    %277 = vmatprep.subr.mxu0 0.0
    %278 = vmatpush1.msra.mxu0 %v239
    %279 = vmatprep.subr.mxu0 0.0
    %280 = vmatpush1.msra.mxu0 %v240
    %281 = vmatprep.subr.mxu0 0.0
    %282 = vmatpush1.msra.mxu0 0.0
    %283 = vmatprep.subr.mxu0 0.0
    %284 = vmatpush1.msra.mxu0 0.0
    %285 = vmatprep.subr.mxu0 0.0
    %286 = vmatpush1.msra.mxu0 0.0
    %287 = vmatprep.subr.mxu0 0.0
    %288 = vmatpush1.msra.mxu0 0.0
    %289 = vmatprep.subr.mxu0 0.0
    %290 = vmatpush1.msra.mxu0 0.0
    %291 = vmatprep.subr.mxu0 0.0
    %292 = vmatpush1.msra.mxu0 0.0
    %293 = vmatprep.subr.mxu0 0.0
    %294 = vmatpush1.msra.mxu0 0.0
    %295 = vmatprep.subr.mxu0 0.0
    %296 = vmatpush1.msra.mxu0 0.0
    %297 = vmatprep.subr.mxu0 0.0
    %298 = vmatpush1.msra.mxu0 0.0
    %299 = vmatprep.subr.mxu0 0.0
    %300 = vmatpush1.msra.mxu0 0.0
    %301 = vmatprep.subr.mxu0 0.0
    %302 = vmatpush1.msra.mxu0 0.0
    %303 = vmatprep.subr.mxu0 0.0
    %304 = vmatpush1.msra.mxu0 0.0
    %305 = vmatprep.subr.mxu0 0.0
    %306 = vmatpush1.msra.mxu0 0.0
    %307 = vmatprep.subr.mxu0 0.0
    %308 = vmatpush1.msra.mxu0 0.0
    %309 = vmatprep.subr.mxu0 0.0
    %310 = vmatpush1.msra.mxu0 0.0
    %311 = vmatprep.subr.mxu0 0.0
    %312 = vmatpush1.msra.mxu0 0.0
    %313 = vmatprep.mubr.f32.mxu0 0.0
    %314 = vmatmul.mubr.f32.gmra.mrb[0].mxu0 %v223
    %v315 = vpop.f32.mrb[0].mxu0
    %v316 = vadd.f32 %v247, %v315
    %v317 = vpop.f32.mrb[0].mxu0
    %318 = vdwg.mxu0
    %319 = vst [vmem:[#allocation7] sm:$0xff] %v316
    // Predicated region
    $region22: #{_mlp_forward_impl.1} parent=1 // pred_check
      _
    $region23: #{_mlp_forward_impl.1} parent=1 // pred_check_branch
      %321 = sbr.rel (0) target = $region25
    $region24: #{_mlp_forward_impl.1} parent=1 // pred_region
      %s323 = ssub.s32 128, 128
      %324 = vsyncadd [#allocation4], %s323
      %s326 = sshll.u32 [#allocation7], 4
      %s327 = int_to_ptr.vmem [resolvable:$true] %s326
      %329 = dma.vmem_to_hbm [thread:$0]  %s327, 128, %s3, [#allocation4]
    $region25: #{_mlp_forward_impl.1} parent=1 // pred_fallthru
      _
    // Predicated region
    $region26: #{_mlp_forward_impl.1} parent=1 // pred_check
      _
    $region27: #{_mlp_forward_impl.1} parent=1 // pred_check_branch
      %331 = sbr.rel (0) target = $region29
    $region28: #{_mlp_forward_impl.1} parent=1 // pred_region
      %332 = dma.done [#allocation4], 128
    $region29: #{_mlp_forward_impl.1} parent=1 // pred_fallthru
      _
    %333 = vsyncpa [#allocation3], 1
    %334 = vsyncpa [#allocation6], 1
    %335 = vsyncpa [#allocation4], 1

</llo_original>
